<compile_context>
chip_gen: v7x
topology: tpu7x:2x2x1
jax: 0.10.0
libtpu: 0.0.40
codegen_flags: <defaults>
</compile_context>

<pallas_src>
import jax
import jax.numpy as jnp
from jax.experimental import pallas as pl
from jax.experimental.pallas import tpu as pltpu

SEQ_LEN = 10            # matches the module's global `seq_len = 10`
H1, H2, OUT = 128, 64, 2
MAX_BATCH_TILE = 2048   # rows per grid step (multiple of 8); ~5 MiB VMEM double-buffered
MIN_SPLIT_ROWS = 1024   # above this, force >=2 grid steps so both v7x TCs engage


def _round_up(n: int, m: int) -> int:
    return ((n + m - 1) // m) * m


def _mlp_kernel(x_ref, w1_ref, b1_ref, w2_ref, b2_ref, w3_ref, b3_ref, o_ref):
    """fc: Linear(seq_len,128) -> ReLU -> Linear(128,64) -> ReLU -> Linear(64,2)."""
    x = x_ref[...]                                                     # (tile, seq_len)
    h1 = jnp.dot(x, w1_ref[...], preferred_element_type=jnp.float32) + b1_ref[...]
    h1 = jnp.maximum(h1, 0.0)                                          # ReLU
    h2 = jnp.dot(h1, w2_ref[...], preferred_element_type=jnp.float32) + b2_ref[...]
    h2 = jnp.maximum(h2, 0.0)                                          # ReLU
    y = jnp.dot(h2, w3_ref[...], preferred_element_type=jnp.float32) + b3_ref[...]
    o_ref[...] = y.astype(o_ref.dtype)                                 # (tile, OUT)


def _choose_tiling(batch: int) -> tuple[int, int]:
    """Balanced, sublane-aligned (tile, nsteps); even nsteps for v7x megacore."""
    padded8 = _round_up(batch, 8)
    nsteps = pl.cdiv(padded8, MAX_BATCH_TILE)
    if nsteps == 1 and padded8 >= MIN_SPLIT_ROWS:
        nsteps = 2                       # let both v7x TensorCores work
    if nsteps > 1 and nsteps % 2 == 1:
        nsteps += 1                      # even step count -> clean 2-TC split
    tile = _round_up(pl.cdiv(padded8, nsteps), 8)
    return tile, nsteps


@jax.jit
def coefficient_learner_forward(x, params):
    """x: (batch, seq_len) float32. params: dict of pre-transposed weights/biases."""
    batch, seq = x.shape
    assert seq == SEQ_LEN

    tile, nsteps = _choose_tiling(batch)          # static under jit (shape-derived)
    padded = tile * nsteps
    grid = (nsteps,)

    # Ragged batch: zero-pad a handful of rows (< 8*(nsteps+1)); padded rows'
    # outputs are garbage (ReLU(b1)-propagated) and are sliced off below.
    x_p = jnp.pad(x, ((0, padded - batch), (0, 0))) if padded != batch else x

    w1, b1 = params["w1"], params["b1"]
    w2, b2 = params["w2"], params["b2"]
    w3, b3 = params["w3"], params["b3"]

    # Weights/biases are small (~37 KiB): constant index_map keeps them
    # resident in VMEM across grid steps (no re-DMA).
    def full(arr):
        return pl.BlockSpec(arr.shape, lambda i: (0,) * arr.ndim)

    out = pl.pallas_call(
        _mlp_kernel,
        out_shape=jax.ShapeDtypeStruct((padded, OUT), jnp.float32),
        grid=grid,
        in_specs=[
            pl.BlockSpec((tile, SEQ_LEN), lambda i: (i, 0)),   # x tile
            full(w1), full(b1), full(w2), full(b2), full(w3), full(b3),
        ],
        out_specs=pl.BlockSpec((tile, OUT), lambda i: (i, 0)),
        compiler_params=pltpu.CompilerParams(
            dimension_semantics=("parallel",),
        ),
    )(x_p, w1, b1, w2, b2, w3, b3)

    return out[:batch]


def init_params(key):
    """Deterministic init mimicking nn.Linear's U(-1/sqrt(fan_in), 1/sqrt(fan_in)).

    Weights stored already transposed to (in_features, out_features); biases
    as (1, out).  All preprocessing happens here, never per forward call."""
    def linear(k, fan_in, fan_out):
        kw, kb = jax.random.split(k)
        bound = 1.0 / jnp.sqrt(jnp.float32(fan_in))
        w = jax.random.uniform(kw, (fan_in, fan_out), jnp.float32, -bound, bound)
        b = jax.random.uniform(kb, (1, fan_out), jnp.float32, -bound, bound)
        return w, b

    k1, k2, k3 = jax.random.split(key, 3)
    w1, b1 = linear(k1, SEQ_LEN, H1)
    w2, b2 = linear(k2, H1, H2)
    w3, b3 = linear(k3, H2, OUT)
    return {"w1": w1, "b1": b1, "w2": w2, "b2": b2, "w3": w3, "b3": b3}


def reference_forward(x, params):
    h1 = jnp.maximum(x @ params["w1"] + params["b1"], 0.0)
    h2 = jnp.maximum(h1 @ params["w2"] + params["b2"], 0.0)
    return h2 @ params["w3"] + params["b3"]


if __name__ == "__main__":
    key = jax.random.PRNGKey(0)
    k_param, k_x = jax.random.split(key)

    params = init_params(k_param)

    # Small demo shape (tile-aligned path).
    batch = 16
    x = jax.random.normal(k_x, (batch, SEQ_LEN), jnp.float32)

    out = coefficient_learner_forward(x, params)
    out = jax.block_until_ready(out)

    ref = reference_forward(x, params)
    assert out.shape == (batch, OUT)
    assert jnp.allclose(out, ref, atol=1e-5, rtol=1e-5), "mismatch vs reference"

    # Ragged batch (not a multiple of 8) exercises the minimal-pad path.
    x2 = jax.random.normal(jax.random.PRNGKey(7), (13, SEQ_LEN), jnp.float32)
    out2 = jax.block_until_ready(coefficient_learner_forward(x2, params))
    assert out2.shape == (13, OUT)
    assert jnp.allclose(out2, reference_forward(x2, params), atol=1e-5, rtol=1e-5)

    print("KERNEL_OK")
</pallas_src>

<mosaic_0001>
module attributes {stable_mosaic.version = 11 : i64} {
  func.func @_mlp_kernel(%arg0: i32, %arg1: memref<16x10xf32, #tpu.memory_space<vmem>>, %arg2: memref<10x128xf32, #tpu.memory_space<vmem>>, %arg3: memref<1x128xf32, #tpu.memory_space<vmem>>, %arg4: memref<128x64xf32, #tpu.memory_space<vmem>>, %arg5: memref<1x64xf32, #tpu.memory_space<vmem>>, %arg6: memref<64x2xf32, #tpu.memory_space<vmem>>, %arg7: memref<1x2xf32, #tpu.memory_space<vmem>>, %arg8: memref<16x2xf32, #tpu.memory_space<vmem>>) attributes {dimension_semantics = [#tpu.dimension_semantics<parallel>], iteration_bounds = array<i64: 1>, scalar_prefetch = 0 : i64, scratch_operands = 0 : i64, tpu.core_type = #tpu.core_type<tc>, window_params = [{transform_indices = @transform_0, window_bounds = array<i64: 16, 10>}, {pipeline_mode = #tpu.pipeline_mode<synchronous>, transform_indices = @transform_1, window_bounds = array<i64: 10, 128>}, {pipeline_mode = #tpu.pipeline_mode<synchronous>, transform_indices = @transform_2, window_bounds = array<i64: 1, 128>}, {pipeline_mode = #tpu.pipeline_mode<synchronous>, transform_indices = @transform_3, window_bounds = array<i64: 128, 64>}, {pipeline_mode = #tpu.pipeline_mode<synchronous>, transform_indices = @transform_4, window_bounds = array<i64: 1, 64>}, {pipeline_mode = #tpu.pipeline_mode<synchronous>, transform_indices = @transform_5, window_bounds = array<i64: 64, 2>}, {pipeline_mode = #tpu.pipeline_mode<synchronous>, transform_indices = @transform_6, window_bounds = array<i64: 1, 2>}, {transform_indices = @transform_7, window_bounds = array<i64: 16, 2>}]} {
    %c0 = arith.constant 0 : index
    %c0_0 = arith.constant 0 : index
    %0 = vector.load %arg1[%c0, %c0_0] : memref<16x10xf32, #tpu.memory_space<vmem>>, vector<16x10xf32>
    %c0_1 = arith.constant 0 : index
    %c0_2 = arith.constant 0 : index
    %1 = vector.load %arg2[%c0_1, %c0_2] : memref<10x128xf32, #tpu.memory_space<vmem>>, vector<10x128xf32>
    %cst = arith.constant dense<0.000000e+00> : vector<16x128xf32>
    %2 = tpu.matmul %0, %1, %cst {dimension_numbers = #tpu.dot_dimension_numbers<[1], [0], [0], [1], [0, 0, 1, 1], [], []>} : vector<16x10xf32>, vector<10x128xf32>, vector<16x128xf32> -> vector<16x128xf32>
    %c0_3 = arith.constant 0 : index
    %c0_4 = arith.constant 0 : index
    %3 = vector.load %arg3[%c0_3, %c0_4] : memref<1x128xf32, #tpu.memory_space<vmem>>, vector<1x128xf32>
    %4 = vector.broadcast %3 : vector<1x128xf32> to vector<16x128xf32>
    %5 = arith.addf %2, %4 : vector<16x128xf32>
    %cst_5 = arith.constant 0.000000e+00 : f32
    %6 = vector.broadcast %cst_5 : f32 to vector<16x128xf32>
    %7 = arith.maximumf %5, %6 : vector<16x128xf32>
    %c0_6 = arith.constant 0 : index
    %c0_7 = arith.constant 0 : index
    %8 = vector.load %arg4[%c0_6, %c0_7] : memref<128x64xf32, #tpu.memory_space<vmem>>, vector<128x64xf32>
    %cst_8 = arith.constant dense<0.000000e+00> : vector<16x64xf32>
    %9 = tpu.matmul %7, %8, %cst_8 {dimension_numbers = #tpu.dot_dimension_numbers<[1], [0], [0], [1], [0, 0, 1, 1], [], []>} : vector<16x128xf32>, vector<128x64xf32>, vector<16x64xf32> -> vector<16x64xf32>
    %c0_9 = arith.constant 0 : index
    %c0_10 = arith.constant 0 : index
    %10 = vector.load %arg5[%c0_9, %c0_10] : memref<1x64xf32, #tpu.memory_space<vmem>>, vector<1x64xf32>
    %11 = vector.broadcast %10 : vector<1x64xf32> to vector<16x64xf32>
    %12 = arith.addf %9, %11 : vector<16x64xf32>
    %cst_11 = arith.constant 0.000000e+00 : f32
    %13 = vector.broadcast %cst_11 : f32 to vector<16x64xf32>
    %14 = arith.maximumf %12, %13 : vector<16x64xf32>
    %c0_12 = arith.constant 0 : index
    %c0_13 = arith.constant 0 : index
    %15 = vector.load %arg6[%c0_12, %c0_13] : memref<64x2xf32, #tpu.memory_space<vmem>>, vector<64x2xf32>
    %cst_14 = arith.constant dense<0.000000e+00> : vector<16x2xf32>
    %16 = tpu.matmul %14, %15, %cst_14 {dimension_numbers = #tpu.dot_dimension_numbers<[1], [0], [0], [1], [0, 0, 1, 1], [], []>} : vector<16x64xf32>, vector<64x2xf32>, vector<16x2xf32> -> vector<16x2xf32>
    %c0_15 = arith.constant 0 : index
    %c0_16 = arith.constant 0 : index
    %17 = vector.load %arg7[%c0_15, %c0_16] : memref<1x2xf32, #tpu.memory_space<vmem>>, vector<1x2xf32>
    %18 = vector.broadcast %17 : vector<1x2xf32> to vector<16x2xf32>
    %19 = arith.addf %16, %18 : vector<16x2xf32>
    %c0_17 = arith.constant 0 : index
    %c0_18 = arith.constant 0 : index
    %20 = vector.load %arg8[%c0_17, %c0_18] : memref<16x2xf32, #tpu.memory_space<vmem>>, vector<16x2xf32>
    tpu.vector_store %arg8[%c0_17, %c0_18], %19 {strides = array<i32>} : memref<16x2xf32, #tpu.memory_space<vmem>>, vector<16x2xf32>,
    return
  }
  func.func @transform_0(%arg0: i32) -> (i32, i32) {
    %c0_i32 = arith.constant 0 : i32
    %c0_i32_0 = arith.constant 0 : i32
    return %arg0, %c0_i32 : i32, i32
  }
  func.func @transform_1(%arg0: i32) -> (i32, i32) {
    %c0_i32 = arith.constant 0 : i32
    %c0_i32_0 = arith.constant 0 : i32
    %c0_i32_1 = arith.constant 0 : i32
    return %c0_i32, %c0_i32_0 : i32, i32
  }
  func.func @transform_2(%arg0: i32) -> (i32, i32) {
    %c0_i32 = arith.constant 0 : i32
    %c0_i32_0 = arith.constant 0 : i32
    %c0_i32_1 = arith.constant 0 : i32
    return %c0_i32, %c0_i32_0 : i32, i32
  }
  func.func @transform_3(%arg0: i32) -> (i32, i32) {
    %c0_i32 = arith.constant 0 : i32
    %c0_i32_0 = arith.constant 0 : i32
    %c0_i32_1 = arith.constant 0 : i32
    return %c0_i32, %c0_i32_0 : i32, i32
  }
  func.func @transform_4(%arg0: i32) -> (i32, i32) {
    %c0_i32 = arith.constant 0 : i32
    %c0_i32_0 = arith.constant 0 : i32
    %c0_i32_1 = arith.constant 0 : i32
    return %c0_i32, %c0_i32_0 : i32, i32
  }
  func.func @transform_5(%arg0: i32) -> (i32, i32) {
    %c0_i32 = arith.constant 0 : i32
    %c0_i32_0 = arith.constant 0 : i32
    %c0_i32_1 = arith.constant 0 : i32
    return %c0_i32, %c0_i32_0 : i32, i32
  }
  func.func @transform_6(%arg0: i32) -> (i32, i32) {
    %c0_i32 = arith.constant 0 : i32
    %c0_i32_0 = arith.constant 0 : i32
    %c0_i32_1 = arith.constant 0 : i32
    return %c0_i32, %c0_i32_0 : i32, i32
  }
  func.func @transform_7(%arg0: i32) -> (i32, i32) {
    %c0_i32 = arith.constant 0 : i32
    %c0_i32_0 = arith.constant 0 : i32
    return %arg0, %c0_i32 : i32, i32
  }
}

</mosaic_0001>

<llo_original>
// kernel: coefficient_learner_forward.1
$region0: #{coefficient_learner_forward.1}
  #allocation0 [shape = 'u32[]', space=smem, size = 0x4, offset = 0x4, fixed_abs, tag = 'smem constant byte address 0x4 - core index']
  #allocation1 [shape = 'u32[144,128]{1,0:T(1,128)}', space=vmem, size = 0x12000, scoped, tag = 'internal scratch']
  %s0 = inlined_call_operand.vmem [shape: f32[16,10], index: 0, kind: input, shape index: {}]
  %s1 = inlined_call_operand.vmem [shape: f32[10,128], index: 1, kind: input, shape index: {}]
  %s2 = inlined_call_operand.vmem [shape: f32[1,128], index: 2, kind: input, shape index: {}]
  %s3 = inlined_call_operand.vmem [shape: f32[128,64], index: 3, kind: input, shape index: {}]
  %s4 = inlined_call_operand.vmem [shape: f32[1,64], index: 4, kind: input, shape index: {}]
  %s5 = inlined_call_operand.vmem [shape: f32[64,2], index: 5, kind: input, shape index: {}]
  %s6 = inlined_call_operand.vmem [shape: f32[1,2], index: 6, kind: input, shape index: {}]
  %s7 = inlined_call_operand.vmem [shape: f32[16,2], index: 7, kind: output, shape index: {}]
  %s8 = sld [smem:[#allocation0]]
  $region38: #{coefficient_learner_forward.1} parent=0
    _
  %s10 = ssub.s32 1, %s8
  %s11 = scalar_select 0, %s10, %s8
  // Predicated region
  $region2: #{coefficient_learner_forward.1} parent=0 // pred_check
    _
  $region3: #{coefficient_learner_forward.1} parent=0 // pred_check_branch
    %13 = sbr.rel (0) target = $region5
  $region4: #{coefficient_learner_forward.1} parent=0 // pred_region
    _
  $region5: #{coefficient_learner_forward.1} parent=0 // pred_fallthru
    _
  // Predicated region
  $region6: #{coefficient_learner_forward.1} parent=0 // pred_check
    _
  $region7: #{coefficient_learner_forward.1} parent=0 // pred_check_branch
    %15 = sbr.rel (0) target = $region9
  $region8: #{coefficient_learner_forward.1} parent=0 // pred_region
    _
  $region9: #{coefficient_learner_forward.1} parent=0 // pred_fallthru
    _
  // Predicated region
  $region10: #{coefficient_learner_forward.1} parent=0 // pred_check
    _
  $region11: #{coefficient_learner_forward.1} parent=0 // pred_check_branch
    %17 = sbr.rel (0) target = $region13
  $region12: #{coefficient_learner_forward.1} parent=0 // pred_region
    _
  $region13: #{coefficient_learner_forward.1} parent=0 // pred_fallthru
    _
  // Predicated region
  $region14: #{coefficient_learner_forward.1} parent=0 // pred_check
    _
  $region15: #{coefficient_learner_forward.1} parent=0 // pred_check_branch
    %19 = sbr.rel (0) target = $region17
  $region16: #{coefficient_learner_forward.1} parent=0 // pred_region
    _
  $region17: #{coefficient_learner_forward.1} parent=0 // pred_fallthru
    _
  // Predicated region
  $region18: #{coefficient_learner_forward.1} parent=0 // pred_check
    _
  $region19: #{coefficient_learner_forward.1} parent=0 // pred_check_branch
    %21 = sbr.rel (0) target = $region21
  $region20: #{coefficient_learner_forward.1} parent=0 // pred_region
    _
  $region21: #{coefficient_learner_forward.1} parent=0 // pred_fallthru
    _
  // Predicated region
  $region22: #{coefficient_learner_forward.1} parent=0 // pred_check
    _
  $region23: #{coefficient_learner_forward.1} parent=0 // pred_check_branch
    %23 = sbr.rel (0) target = $region25
  $region24: #{coefficient_learner_forward.1} parent=0 // pred_region
    _
  $region25: #{coefficient_learner_forward.1} parent=0 // pred_fallthru
    _
  // Predicated region
  $region26: #{coefficient_learner_forward.1} parent=0 // pred_check
    _
  $region27: #{coefficient_learner_forward.1} parent=0 // pred_check_branch
    %25 = sbr.rel (0) target = $region29
  $region28: #{coefficient_learner_forward.1} parent=0 // pred_region
    _
  $region29: #{coefficient_learner_forward.1} parent=0 // pred_fallthru
    _
  %v26 = vld [vmem:[%s0] sm:$0xff]
  %v27 = vld [vmem:[%s0 + $0x8] sm:$0xff]
  %v28 = vld [vmem:[%s1] sm:$0xff]
  %v29 = vld [vmem:[%s1 + $0x8] sm:$0x3]
  %v30 = vld [vmem:[%s2] sm:$0x1]
  %v32 = vlaneseq
  %v33 = vshrl.u32 %v32, 7
  %v34 = vsub.s32 0, %v33
  %v35 = vrot.slane %v30, %v34
  %vm37 = vcmask 80896
  %v39 = vsel %vm37, %v26, 0
  %v42 = vsel %vm37, %v27, 0
  %vm44 = vcmask 1041408
  %v46 = vsel %vm44, %v29, 0
  %48 = vmatprep.subr.mxu0 0.0
  %49 = vmatpush1.msra.mxu0 %v28
  %50 = vmatprep.subr.mxu0 0.0
  %51 = vmatpush1.msra.mxu0 %v46
  %52 = vmatprep.subr.mxu0 0.0
  %53 = vmatpush1.msra.mxu0 0.0
  %54 = vmatprep.subr.mxu0 0.0
  %55 = vmatpush1.msra.mxu0 0.0
  %56 = vmatprep.subr.mxu0 0.0
  %57 = vmatpush1.msra.mxu0 0.0
  %58 = vmatprep.subr.mxu0 0.0
  %59 = vmatpush1.msra.mxu0 0.0
  %60 = vmatprep.subr.mxu0 0.0
  %61 = vmatpush1.msra.mxu0 0.0
  %62 = vmatprep.subr.mxu0 0.0
  %63 = vmatpush1.msra.mxu0 0.0
  %64 = vmatprep.subr.mxu0 0.0
  %65 = vmatpush1.msra.mxu0 0.0
  %66 = vmatprep.subr.mxu0 0.0
  %67 = vmatpush1.msra.mxu0 0.0
  %68 = vmatprep.subr.mxu0 0.0
  %69 = vmatpush1.msra.mxu0 0.0
  %70 = vmatprep.subr.mxu0 0.0
  %71 = vmatpush1.msra.mxu0 0.0
  %72 = vmatprep.subr.mxu0 0.0
  %73 = vmatpush1.msra.mxu0 0.0
  %74 = vmatprep.subr.mxu0 0.0
  %75 = vmatpush1.msra.mxu0 0.0
  %76 = vmatprep.subr.mxu0 0.0
  %77 = vmatpush1.msra.mxu0 0.0
  %78 = vmatprep.subr.mxu0 0.0
  %79 = vmatpush1.msra.mxu0 0.0
  %80 = vmatprep.subr.mxu0 0.0
  %81 = vmatpush1.msra.mxu0 0.0
  %82 = vmatprep.subr.mxu0 0.0
  %83 = vmatpush1.msra.mxu0 0.0
  %84 = vmatprep.subr.mxu0 0.0
  %85 = vmatpush1.msra.mxu0 0.0
  %86 = vmatprep.subr.mxu0 0.0
  %87 = vmatpush1.msra.mxu0 0.0
  %88 = vmatprep.subr.mxu0 0.0
  %89 = vmatpush1.msra.mxu0 0.0
  %90 = vmatprep.subr.mxu0 0.0
  %91 = vmatpush1.msra.mxu0 0.0
  %92 = vmatprep.subr.mxu0 0.0
  %93 = vmatpush1.msra.mxu0 0.0
  %94 = vmatprep.subr.mxu0 0.0
  %95 = vmatpush1.msra.mxu0 0.0
  %96 = vmatprep.subr.mxu0 0.0
  %97 = vmatpush1.msra.mxu0 0.0
  %98 = vmatprep.subr.mxu0 0.0
  %99 = vmatpush1.msra.mxu0 0.0
  %100 = vmatprep.subr.mxu0 0.0
  %101 = vmatpush1.msra.mxu0 0.0
  %102 = vmatprep.subr.mxu0 0.0
  %103 = vmatpush1.msra.mxu0 0.0
  %104 = vmatprep.subr.mxu0 0.0
  %105 = vmatpush1.msra.mxu0 0.0
  %106 = vmatprep.subr.mxu0 0.0
  %107 = vmatpush1.msra.mxu0 0.0
  %108 = vmatprep.subr.mxu0 0.0
  %109 = vmatpush1.msra.mxu0 0.0
  %110 = vmatprep.subr.mxu0 0.0
  %111 = vmatpush1.msra.mxu0 0.0
  %112 = vmatprep.mubr.f32.mxu0 0.0
  %113 = vmatmul.mubr.f32.gmra.mrb[0].mxu0 %v39
  %v114 = vpop.f32.mrb[0].mxu0
  %v115 = vadd.f32 %v35, %v114
  %v116 = vpop.f32.mrb[0].mxu0
  %117 = vmatprep.mubr.f32.mxu0 0.0
  %118 = vmatmul.mubr.f32.gmra.mrb[0].mxu0 %v42
  %v119 = vpop.f32.mrb[0].mxu0
  %v120 = vadd.f32 %v35, %v119
  %v121 = vpop.f32.mrb[0].mxu0
  %122 = vdwg.mxu0
  %v123 = vmax.f32 %v115, 0.0
  %v124 = vmax.f32 %v120, 0.0
  %v125 = vld [vmem:[%s3] sm:$0xff]
  %v126 = vld [vmem:[%s3 + $0x8] sm:$0xff]
  %v127 = vld [vmem:[%s3 + $0x10] sm:$0xff]
  %v128 = vld [vmem:[%s3 + $0x18] sm:$0xff]
  %v129 = vld [vmem:[%s3 + $0x20] sm:$0xff]
  %v130 = vld [vmem:[%s3 + $0x28] sm:$0xff]
  %v131 = vld [vmem:[%s3 + $0x30] sm:$0xff]
  %v132 = vld [vmem:[%s3 + $0x38] sm:$0xff]
  %v133 = vld [vmem:[%s3 + $0x40] sm:$0xff]
  %v134 = vld [vmem:[%s3 + $0x48] sm:$0xff]
  %v135 = vld [vmem:[%s3 + $0x50] sm:$0xff]
  %v136 = vld [vmem:[%s3 + $0x58] sm:$0xff]
  %v137 = vld [vmem:[%s3 + $0x60] sm:$0xff]
  %v138 = vld [vmem:[%s3 + $0x68] sm:$0xff]
  %v139 = vld [vmem:[%s3 + $0x70] sm:$0xff]
  %v140 = vld [vmem:[%s3 + $0x78] sm:$0xff]
  %v141 = vld [vmem:[%s4] sm:$0x1]
  %v143 = vlaneseq
  %v144 = vshrl.u32 %v143, 7
  %v145 = vsub.s32 0, %v144
  %v146 = vrot.slane %v141, %v145
  %148 = vmatprep.subr.mxu0 0.0
  %149 = vmatpush1.msra.mxu0 %v125
  %150 = vmatprep.subr.mxu0 0.0
  %151 = vmatpush1.msra.mxu0 %v126
  %152 = vmatprep.subr.mxu0 0.0
  %153 = vmatpush1.msra.mxu0 %v127
  %154 = vmatprep.subr.mxu0 0.0
  %155 = vmatpush1.msra.mxu0 %v128
  %156 = vmatprep.subr.mxu0 0.0
  %157 = vmatpush1.msra.mxu0 %v129
  %158 = vmatprep.subr.mxu0 0.0
  %159 = vmatpush1.msra.mxu0 %v130
  %160 = vmatprep.subr.mxu0 0.0
  %161 = vmatpush1.msra.mxu0 %v131
  %162 = vmatprep.subr.mxu0 0.0
  %163 = vmatpush1.msra.mxu0 %v132
  %164 = vmatprep.subr.mxu0 0.0
  %165 = vmatpush1.msra.mxu0 %v133
  %166 = vmatprep.subr.mxu0 0.0
  %167 = vmatpush1.msra.mxu0 %v134
  %168 = vmatprep.subr.mxu0 0.0
  %169 = vmatpush1.msra.mxu0 %v135
  %170 = vmatprep.subr.mxu0 0.0
  %171 = vmatpush1.msra.mxu0 %v136
  %172 = vmatprep.subr.mxu0 0.0
  %173 = vmatpush1.msra.mxu0 %v137
  %174 = vmatprep.subr.mxu0 0.0
  %175 = vmatpush1.msra.mxu0 %v138
  %176 = vmatprep.subr.mxu0 0.0
  %177 = vmatpush1.msra.mxu0 %v139
  %178 = vmatprep.subr.mxu0 0.0
  %179 = vmatpush1.msra.mxu0 %v140
  %180 = vmatprep.subr.mxu0 0.0
  %181 = vmatpush1.msra.mxu0 0.0
  %182 = vmatprep.subr.mxu0 0.0
  %183 = vmatpush1.msra.mxu0 0.0
  %184 = vmatprep.subr.mxu0 0.0
  %185 = vmatpush1.msra.mxu0 0.0
  %186 = vmatprep.subr.mxu0 0.0
  %187 = vmatpush1.msra.mxu0 0.0
  %188 = vmatprep.subr.mxu0 0.0
  %189 = vmatpush1.msra.mxu0 0.0
  %190 = vmatprep.subr.mxu0 0.0
  %191 = vmatpush1.msra.mxu0 0.0
  %192 = vmatprep.subr.mxu0 0.0
  %193 = vmatpush1.msra.mxu0 0.0
  %194 = vmatprep.subr.mxu0 0.0
  %195 = vmatpush1.msra.mxu0 0.0
  %196 = vmatprep.subr.mxu0 0.0
  %197 = vmatpush1.msra.mxu0 0.0
  %198 = vmatprep.subr.mxu0 0.0
  %199 = vmatpush1.msra.mxu0 0.0
  %200 = vmatprep.subr.mxu0 0.0
  %201 = vmatpush1.msra.mxu0 0.0
  %202 = vmatprep.subr.mxu0 0.0
  %203 = vmatpush1.msra.mxu0 0.0
  %204 = vmatprep.subr.mxu0 0.0
  %205 = vmatpush1.msra.mxu0 0.0
  %206 = vmatprep.subr.mxu0 0.0
  %207 = vmatpush1.msra.mxu0 0.0
  %208 = vmatprep.subr.mxu0 0.0
  %209 = vmatpush1.msra.mxu0 0.0
  %210 = vmatprep.subr.mxu0 0.0
  %211 = vmatpush1.msra.mxu0 0.0
  %212 = vmatprep.mubr.f32.mxu0 0.0
  %213 = vmatmul.mubr.f32.gmra.mrb[0].mxu0 %v123
  %v214 = vpop.f32.mrb[0].mxu0
  %v215 = vadd.f32 %v146, %v214
  %v216 = vpop.f32.mrb[0].mxu0
  %217 = vmatprep.mubr.f32.mxu0 0.0
  %218 = vmatmul.mubr.f32.gmra.mrb[0].mxu0 %v124
  %v219 = vpop.f32.mrb[0].mxu0
  %v220 = vadd.f32 %v146, %v219
  %v221 = vpop.f32.mrb[0].mxu0
  %222 = vdwg.mxu0
  %v223 = vmax.f32 %v215, 0.0
  %v224 = vmax.f32 %v220, 0.0
  %v225 = vld [vmem:[%s5] sm:$0xff]
  %v226 = vld [vmem:[%s5 + $0x8] sm:$0xff]
  %v227 = vld [vmem:[%s5 + $0x10] sm:$0xff]
  %v228 = vld [vmem:[%s5 + $0x18] sm:$0xff]
  %v229 = vld [vmem:[%s5 + $0x20] sm:$0xff]
  %v230 = vld [vmem:[%s5 + $0x28] sm:$0xff]
  %v231 = vld [vmem:[%s5 + $0x30] sm:$0xff]
  %v232 = vld [vmem:[%s5 + $0x38] sm:$0xff]
  %v233 = vld [vmem:[%s6] sm:$0x1]
  %v235 = vlaneseq
  %v236 = vshrl.u32 %v235, 7
  %v237 = vsub.s32 0, %v236
  %v238 = vrot.slane %v233, %v237
  %vm240 = vcmask 523264
  %v242 = vsel %vm240, %v223, 0
  %v245 = vsel %vm240, %v224, 0
  %247 = vmatprep.subr.mxu0 0.0
  %248 = vmatpush1.msra.mxu0 %v225
  %249 = vmatprep.subr.mxu0 0.0
  %250 = vmatpush1.msra.mxu0 %v226
  %251 = vmatprep.subr.mxu0 0.0
  %252 = vmatpush1.msra.mxu0 %v227
  %253 = vmatprep.subr.mxu0 0.0
  %254 = vmatpush1.msra.mxu0 %v228
  %255 = vmatprep.subr.mxu0 0.0
  %256 = vmatpush1.msra.mxu0 %v229
  %257 = vmatprep.subr.mxu0 0.0
  %258 = vmatpush1.msra.mxu0 %v230
  %259 = vmatprep.subr.mxu0 0.0
  %260 = vmatpush1.msra.mxu0 %v231
  %261 = vmatprep.subr.mxu0 0.0
  %262 = vmatpush1.msra.mxu0 %v232
  %263 = vmatprep.subr.mxu0 0.0
  %264 = vmatpush1.msra.mxu0 0.0
  %265 = vmatprep.subr.mxu0 0.0
  %266 = vmatpush1.msra.mxu0 0.0
  %267 = vmatprep.subr.mxu0 0.0
  %268 = vmatpush1.msra.mxu0 0.0
  %269 = vmatprep.subr.mxu0 0.0
  %270 = vmatpush1.msra.mxu0 0.0
  %271 = vmatprep.subr.mxu0 0.0
  %272 = vmatpush1.msra.mxu0 0.0
  %273 = vmatprep.subr.mxu0 0.0
  %274 = vmatpush1.msra.mxu0 0.0
  %275 = vmatprep.subr.mxu0 0.0
  %276 = vmatpush1.msra.mxu0 0.0
  %277 = vmatprep.subr.mxu0 0.0
  %278 = vmatpush1.msra.mxu0 0.0
  %279 = vmatprep.subr.mxu0 0.0
  %280 = vmatpush1.msra.mxu0 0.0
  %281 = vmatprep.subr.mxu0 0.0
  %282 = vmatpush1.msra.mxu0 0.0
  %283 = vmatprep.subr.mxu0 0.0
  %284 = vmatpush1.msra.mxu0 0.0
  %285 = vmatprep.subr.mxu0 0.0
  %286 = vmatpush1.msra.mxu0 0.0
  %287 = vmatprep.subr.mxu0 0.0
  %288 = vmatpush1.msra.mxu0 0.0
  %289 = vmatprep.subr.mxu0 0.0
  %290 = vmatpush1.msra.mxu0 0.0
  %291 = vmatprep.subr.mxu0 0.0
  %292 = vmatpush1.msra.mxu0 0.0
  %293 = vmatprep.subr.mxu0 0.0
  %294 = vmatpush1.msra.mxu0 0.0
  %295 = vmatprep.subr.mxu0 0.0
  %296 = vmatpush1.msra.mxu0 0.0
  %297 = vmatprep.subr.mxu0 0.0
  %298 = vmatpush1.msra.mxu0 0.0
  %299 = vmatprep.subr.mxu0 0.0
  %300 = vmatpush1.msra.mxu0 0.0
  %301 = vmatprep.subr.mxu0 0.0
  %302 = vmatpush1.msra.mxu0 0.0
  %303 = vmatprep.subr.mxu0 0.0
  %304 = vmatpush1.msra.mxu0 0.0
  %305 = vmatprep.subr.mxu0 0.0
  %306 = vmatpush1.msra.mxu0 0.0
  %307 = vmatprep.subr.mxu0 0.0
  %308 = vmatpush1.msra.mxu0 0.0
  %309 = vmatprep.subr.mxu0 0.0
  %310 = vmatpush1.msra.mxu0 0.0
  %311 = vmatprep.mubr.f32.mxu0 0.0
  %312 = vmatmul.mubr.f32.gmra.mrb[0].mxu0 %v242
  %v313 = vpop.f32.mrb[0].mxu0
  %v314 = vadd.f32 %v238, %v313
  %v315 = vpop.f32.mrb[0].mxu0
  %316 = vmatprep.mubr.f32.mxu0 0.0
  %317 = vmatmul.mubr.f32.gmra.mrb[0].mxu0 %v245
  %v318 = vpop.f32.mrb[0].mxu0
  %v319 = vadd.f32 %v238, %v318
  %v320 = vpop.f32.mrb[0].mxu0
  %321 = vdwg.mxu0
  %vm322 = vcmask 15360
  %323 = vst.msk [vmem:[%s7] sm:$0xff] %vm322, %v314
  %324 = vst.msk [vmem:[%s7 + $0x8] sm:$0xff] %vm322, %v319
  // Predicated region
  $region30: #{coefficient_learner_forward.1} parent=0 // pred_check
    _
  $region31: #{coefficient_learner_forward.1} parent=0 // pred_check_branch
    %326 = sbr.rel (0) target = $region33
  $region32: #{coefficient_learner_forward.1} parent=0 // pred_region
    _
  $region33: #{coefficient_learner_forward.1} parent=0 // pred_fallthru
    _
  // Predicated region
  $region34: #{coefficient_learner_forward.1} parent=0 // pred_check
    _
  $region35: #{coefficient_learner_forward.1} parent=0 // pred_check_branch
    %328 = sbr.rel (0) target = $region37
  $region36: #{coefficient_learner_forward.1} parent=0 // pred_region
    _
  $region37: #{coefficient_learner_forward.1} parent=0 // pred_fallthru
    _

</llo_original>
